<compile_context>
chip_gen: v6e
topology: v6e:2x2x1
jax: 0.10.0
libtpu: 0.0.40
codegen_flags: <defaults>
</compile_context>

<pallas_src>
import functools

import jax
import jax.numpy as jnp
from jax.experimental import pallas as pl
from jax.experimental.pallas import tpu as pltpu


def _round_up(a, b):
    return -(-a // b) * b


def _vq_kernel(x_ref, wt_ref, w_ref, whalf_ref, q_ref, sse_ref, *,
               tile_n, rows_per_block, n_valid):
    """One tile of rows, processed in row sub-blocks to bound vreg live ranges."""
    wt = wt_ref[...]        # (D, Kp) pre-transposed codebook (lane-dense), f32
    w = w_ref[...]          # (Kp, D) codebook for the one-hot gather matmul, f32
    whalf = whalf_ref[...]  # (1, Kp) 0.5*|w|^2 (padded rows carry +1e30)

    tile_base = pl.program_id(0) * tile_n
    num_sub = tile_n // rows_per_block

    def body(s, sse_acc):
        r0 = pl.multiple_of(s * rows_per_block, rows_per_block)
        x = x_ref[pl.ds(r0, rows_per_block), :].astype(jnp.float32)      # (RB, D)

        # MXU: x @ w^T via the pre-transposed (D, Kp) operand (no in-kernel
        # transpose / relayout work). f32 kept on purpose (argmin ties).
        xw = jnp.dot(x, wt, preferred_element_type=jnp.float32)          # (RB, Kp)

        # argmin_k(|x|^2 + |w_k|^2 - 2 x.w_k) == argmin_k(0.5*|w_k|^2 - x.w_k):
        # per-row |x|^2 constant dropped. Padded codebook rows hold +1e30 so
        # they never win (safe while |x.w| stays far below 1e30).
        # TODO(synk): if bundle dumps show VALU-bound, fold whalf into the MXU
        # by augmenting the contraction (x_aug = [x, 1], w_aug = [-w, whalf]).
        dist = whalf - xw                                                 # (RB, Kp)

        # First-occurrence argmin (matches torch.argmin); kept 2-D.
        idx = jnp.argmin(dist, axis=1, keepdims=True)                     # (RB, 1)
        lane = jax.lax.broadcasted_iota(jnp.int32, dist.shape, 1)
        onehot = (lane == idx).astype(jnp.float32)                        # (RB, Kp)

        # Codebook gather as an MXU matmul (the scatter_/matmul pair in torch).
        quant = jnp.dot(onehot, w, preferred_element_type=jnp.float32)    # (RB, D)

        # TODO(synk): for store-bound production shapes (D=32 < 128 lanes) a
        # lane-dense repacked output (blocks reshaped to (*, 128)) would turn
        # the 3/4-masked vst into full-lane stores; skipped pending measurement
        # of the in-kernel relayout cost.
        q_ref[pl.ds(r0, rows_per_block), :] = quant.astype(q_ref.dtype)

        # Per-sub-block partial SSE; rows padded past the true N are masked.
        row = (tile_base + r0
               + jax.lax.broadcasted_iota(jnp.int32, (rows_per_block, 1), 0))
        diff = jnp.where(row < n_valid, quant - x, 0.0)
        return sse_acc + jnp.sum(diff * diff)

    tile_sse = jax.lax.fori_loop(0, num_sub, body, jnp.float32(0.0), unroll=True)

    # Lane-dense (1, 1, 128) partial block: unmasked full-lane store.  The
    # wrapper reads [:, 0, 0] and sums the per-tile partials (race-free, so the
    # grid axis stays "parallel" / megacore-shardable).
    sse_ref[...] = jnp.broadcast_to(tile_sse, sse_ref.shape).astype(sse_ref.dtype)


@functools.partial(jax.jit, static_argnames=("beta", "tile_n", "rows_per_block"))
def quantization_layer_forward(x, embedding_weight, *, beta,
                               tile_n=2048, rows_per_block=128):
    """Returns (quantized_detach, vq_loss) with the same values as PyTorch."""
    n, d = x.shape
    k, d2 = embedding_weight.shape
    assert d == d2
    # f32 sublane constraint (use multiples of 16 if feeding bf16 inputs).
    assert tile_n % 8 == 0 and rows_per_block % 8 == 0, (
        "tile_n / rows_per_block must be multiples of 8")

    # --- tile-size policy ---------------------------------------------------
    # Big tiles amortize the ~0.35us per-grid-step overhead, but cap tile_n so
    # the grid keeps ~>=8 steps when N allows it (keeps both v7x TensorCores
    # busy under dimension_semantics=("parallel",) and preserves pipelining).
    tile_cap = max(8, _round_up(-(-n // 8), 8))
    tile_n = max(8, min(tile_n, tile_cap))
    rows_per_block = min(rows_per_block, tile_n)
    tile_n = _round_up(tile_n, rows_per_block)

    num_tiles = -(-n // tile_n)
    n_pad = num_tiles * tile_n
    x_p = jnp.pad(x, ((0, n_pad - n), (0, 0))) if n_pad != n else x

    # --- pad codebook K to a lane-full multiple of 128 ------------------------
    k_pad = max(128, _round_up(k, 128))
    w32 = embedding_weight.astype(jnp.float32)
    whalf = 0.5 * jnp.sum(w32 * w32, axis=1)                # (K,)
    if k_pad != k:
        w_p = jnp.pad(w32, ((0, k_pad - k), (0, 0)))
        whalf = jnp.pad(whalf, (0, k_pad - k),
                        constant_values=jnp.float32(1e30))   # never selected
    else:
        w_p = w32
    whalf = whalf.reshape(1, k_pad)
    w_t = w_p.T                                              # (D, Kp), one-time transpose

    kernel = functools.partial(_vq_kernel, tile_n=tile_n,
                               rows_per_block=rows_per_block, n_valid=n)

    quantized_p, sse_parts = pl.pallas_call(
        kernel,
        out_shape=(
            jax.ShapeDtypeStruct((n_pad, d), x.dtype),
            jax.ShapeDtypeStruct((num_tiles, 1, 128), jnp.float32),
        ),
        grid_spec=pltpu.PrefetchScalarGridSpec(
            num_scalar_prefetch=0,
            grid=(num_tiles,),
            in_specs=[
                pl.BlockSpec((tile_n, d), lambda i: (i, 0)),     # x rows
                pl.BlockSpec((d, k_pad), lambda i: (0, 0)),      # codebook^T (resident)
                pl.BlockSpec((k_pad, d), lambda i: (0, 0)),      # codebook   (resident)
                pl.BlockSpec((1, k_pad), lambda i: (0, 0)),      # 0.5*|w|^2  (resident)
            ],
            out_specs=[
                pl.BlockSpec((tile_n, d), lambda i: (i, 0)),     # quantized rows
                pl.BlockSpec((1, 1, 128), lambda i: (i, 0, 0)),  # per-tile SSE partial
            ],
        ),
        compiler_params=pltpu.CompilerParams(
            dimension_semantics=("parallel",),   # no cross-iteration dependencies
        ),
    )(x_p, w_t, w_p, whalf)

    quantized = quantized_p[:n]
    sse = jnp.sum(sse_parts[:, 0, 0])
    mse = sse / jnp.float32(n * d)      # F.mse_loss default reduction='mean'
    commitment_loss = mse               # mse(quantized.detach(), x) -- same value
    embedding_loss = mse                # mse(quantized, x.detach()) -- same value
    vq_loss = commitment_loss * beta + embedding_loss

    # (quantized - x).detach() + x == quantized in value (straight-through).
    # TODO(synk): forward-only; no custom_vjp reproducing the detach()/STE
    # gradient structure of the torch module.
    return quantized, vq_loss


def xavier_uniform(key, shape, dtype=jnp.float32):
    """torch.nn.init.xavier_uniform_ for a 2-D (fan_out, fan_in) weight."""
    fan_out, fan_in = shape
    bound = (6.0 / (fan_in + fan_out)) ** 0.5
    return jax.random.uniform(key, shape, dtype=dtype, minval=-bound, maxval=bound)


def reference_forward(x, w, beta):
    """Plain-JAX reference for sanity checking (mirrors the torch math)."""
    dist = (
        jnp.sum(x ** 2, axis=1, keepdims=True)
        + jnp.sum(w ** 2, axis=1)
        - 2.0 * x @ w.T
    )
    idx = jnp.argmin(dist, axis=1)
    quant = w[idx]
    mse = jnp.mean((quant - x) ** 2)
    return quant, mse * beta + mse


if __name__ == "__main__":
    # parameters = {'nout': 32, 'num_embeddings': 64, 'beta': 0.25}
    embedding_dim = 32
    num_embeddings = 64
    beta = 0.25

    key = jax.random.PRNGKey(0)
    k_x1, k_x2, k_w = jax.random.split(key, 3)

    embedding_weight = xavier_uniform(k_w, (num_embeddings, embedding_dim))

    # Case 1: small N, not a multiple of any tile -> exercises the tile_n cap
    # (multi-step "parallel" grid even at tiny N) and row masking in the loss.
    x1 = jax.random.normal(k_x1, (200, embedding_dim), dtype=jnp.float32)
    ref_q1, ref_l1 = reference_forward(x1, embedding_weight, beta)
    q1, l1 = quantization_layer_forward(x1, embedding_weight, beta=beta)
    q1 = jax.block_until_ready(q1)
    l1 = jax.block_until_ready(l1)
    assert jnp.allclose(q1, ref_q1, atol=1e-5), "quantized mismatch (case 1)"
    assert jnp.allclose(l1, ref_l1, atol=1e-5), "loss mismatch (case 1)"

    # Case 2: larger N -> multiple 128-row sub-blocks per tile (fori_loop path)
    # plus padded rows in the final tile.
    x2 = jax.random.normal(k_x2, (2000, embedding_dim), dtype=jnp.float32)
    ref_q2, ref_l2 = reference_forward(x2, embedding_weight, beta)
    q2, l2 = quantization_layer_forward(x2, embedding_weight, beta=beta,
                                        tile_n=2048, rows_per_block=128)
    q2 = jax.block_until_ready(q2)
    l2 = jax.block_until_ready(l2)
    assert jnp.allclose(q2, ref_q2, atol=1e-5), "quantized mismatch (case 2)"
    assert jnp.allclose(l2, ref_l2, atol=1e-5), "loss mismatch (case 2)"

    print("KERNEL_OK")
</pallas_src>

<mosaic_0001>
module attributes {stable_mosaic.version = 11 : i64} {
  func.func @_vq_kernel(%arg0: i32, %arg1: memref<32x32xf32, #tpu.memory_space<vmem>>, %arg2: memref<32x128xf32, #tpu.memory_space<vmem>>, %arg3: memref<128x32xf32, #tpu.memory_space<vmem>>, %arg4: memref<1x128xf32, #tpu.memory_space<vmem>>, %arg5: memref<32x32xf32, #tpu.memory_space<vmem>>, %arg6: memref<1x1x128xf32, #tpu.memory_space<vmem>>) attributes {dimension_semantics = [#tpu.dimension_semantics<parallel>], iteration_bounds = array<i64: 7>, scalar_prefetch = 0 : i64, scratch_operands = 0 : i64, tpu.core_type = #tpu.core_type<tc>, window_params = [{transform_indices = @transform_0, window_bounds = array<i64: 32, 32>}, {pipeline_mode = #tpu.pipeline_mode<synchronous>, transform_indices = @transform_1, window_bounds = array<i64: 32, 128>}, {pipeline_mode = #tpu.pipeline_mode<synchronous>, transform_indices = @transform_2, window_bounds = array<i64: 128, 32>}, {pipeline_mode = #tpu.pipeline_mode<synchronous>, transform_indices = @transform_3, window_bounds = array<i64: 1, 128>}, {transform_indices = @transform_4, window_bounds = array<i64: 32, 32>}, {transform_indices = @transform_5, window_bounds = array<i64: 1, 1, 128>}]} {
    %c0 = arith.constant 0 : index
    %c0_0 = arith.constant 0 : index
    %0 = vector.load %arg2[%c0, %c0_0] : memref<32x128xf32, #tpu.memory_space<vmem>>, vector<32x128xf32>
    %c0_1 = arith.constant 0 : index
    %c0_2 = arith.constant 0 : index
    %1 = vector.load %arg3[%c0_1, %c0_2] : memref<128x32xf32, #tpu.memory_space<vmem>>, vector<128x32xf32>
    %c0_3 = arith.constant 0 : index
    %c0_4 = arith.constant 0 : index
    %2 = vector.load %arg4[%c0_3, %c0_4] : memref<1x128xf32, #tpu.memory_space<vmem>>, vector<1x128xf32>
    %c32_i32 = arith.constant 32 : i32
    %3 = arith.muli %arg0, %c32_i32 : i32
    %cst = arith.constant 0.000000e+00 : f32
    %c0_i32 = arith.constant 0 : i32
    %c32_i32_5 = arith.constant 32 : i32
    %4 = arith.muli %c0_i32, %c32_i32_5 : i32
    %5 = tpu.assume_multiple %4, 32 : i32
    %6 = arith.index_cast %5 : i32 to index
    %c0_6 = arith.constant 0 : index
    %7 = vector.load %arg1[%6, %c0_6] : memref<32x32xf32, #tpu.memory_space<vmem>>, vector<32x32xf32>
    %cst_7 = arith.constant dense<0.000000e+00> : vector<32x128xf32>
    %8 = tpu.matmul %7, %0, %cst_7 {dimension_numbers = #tpu.dot_dimension_numbers<[1], [0], [0], [1], [0, 0, 1, 1], [], []>} : vector<32x32xf32>, vector<32x128xf32>, vector<32x128xf32> -> vector<32x128xf32>
    %9 = vector.broadcast %2 : vector<1x128xf32> to vector<32x128xf32>
    %10 = arith.subf %9, %8 : vector<32x128xf32>
    %11 = tpu.reduce_index %10 {axis = 1 : i32, kind = #tpu.reduction_kind<arg_min>} : vector<32x128xf32> -> vector<32xi32>
    %12 = vector.shape_cast %11 : vector<32xi32> to vector<32x1xi32>
    %13 = tpu.iota {dimensions = array<i32: 1>} : vector<32x128xi32>
    %14 = vector.broadcast %12 : vector<32x1xi32> to vector<32x128xi32>
    %15 = arith.cmpi eq, %13, %14 : vector<32x128xi32>
    %16 = arith.extui %15 : vector<32x128xi1> to vector<32x128xi32>
    %17 = arith.sitofp %16 : vector<32x128xi32> to vector<32x128xf32>
    %cst_8 = arith.constant dense<0.000000e+00> : vector<32x32xf32>
    %18 = tpu.matmul %17, %1, %cst_8 {dimension_numbers = #tpu.dot_dimension_numbers<[1], [0], [0], [1], [0, 0, 1, 1], [], []>} : vector<32x128xf32>, vector<128x32xf32>, vector<32x32xf32> -> vector<32x32xf32>
    %19 = arith.index_cast %5 : i32 to index
    %c0_9 = arith.constant 0 : index
    %20 = vector.load %arg5[%19, %c0_9] : memref<32x32xf32, #tpu.memory_space<vmem>>, vector<32x32xf32>
    tpu.vector_store %arg5[%19, %c0_9], %18 {strides = array<i32>} : memref<32x32xf32, #tpu.memory_space<vmem>>, vector<32x32xf32>,
    %21 = arith.addi %3, %5 : i32
    %22 = tpu.iota {dimensions = array<i32: 0>} : vector<32x1xi32>
    %23 = vector.broadcast %21 : i32 to vector<32x1xi32>
    %24 = arith.addi %23, %22 : vector<32x1xi32>
    %c200_i32 = arith.constant 200 : i32
    %25 = vector.broadcast %c200_i32 : i32 to vector<32x1xi32>
    %26 = arith.cmpi slt, %24, %25 : vector<32x1xi32>
    %27 = arith.subf %18, %7 : vector<32x32xf32>
    %cst_10 = arith.constant 0.000000e+00 : f32
    %28 = vector.shape_cast %26 : vector<32x1xi1> to vector<32x1xi1>
    %29 = vector.broadcast %28 : vector<32x1xi1> to vector<32x32xi1>
    %30 = vector.broadcast %cst_10 : f32 to vector<32x32xf32>
    %31 = arith.select %29, %27, %30 : vector<32x32xi1>, vector<32x32xf32>
    %32 = arith.mulf %31, %31 : vector<32x32xf32>
    %33 = vector.shape_cast %32 : vector<32x32xf32> to vector<1x32x32xf32>
    %cst_11 = arith.constant dense<0.000000e+00> : vector<1xf32>
    %34 = vector.multi_reduction <add>, %33, %cst_11 [1, 2] : vector<1x32x32xf32> to vector<1xf32>
    %35 = vector.shape_cast %34 : vector<1xf32> to vector<1x1x1xf32>
    %36 = vector.extract %35[0, 0, 0] : f32 from vector<1x1x1xf32>
    %37 = arith.addf %cst, %36 : f32
    %c1_i32 = arith.constant 1 : i32
    %38 = vector.broadcast %37 : f32 to vector<1x1x128xf32>
    %c0_12 = arith.constant 0 : index
    %c0_13 = arith.constant 0 : index
    %c0_14 = arith.constant 0 : index
    %39 = vector.load %arg6[%c0_12, %c0_13, %c0_14] : memref<1x1x128xf32, #tpu.memory_space<vmem>>, vector<1x1x128xf32>
    tpu.vector_store %arg6[%c0_12, %c0_13, %c0_14], %38 {strides = array<i32>} : memref<1x1x128xf32, #tpu.memory_space<vmem>>, vector<1x1x128xf32>,
    return
  }
  func.func @transform_0(%arg0: i32) -> (i32, i32) {
    %c0_i32 = arith.constant 0 : i32
    %c0_i32_0 = arith.constant 0 : i32
    return %arg0, %c0_i32 : i32, i32
  }
  func.func @transform_1(%arg0: i32) -> (i32, i32) {
    %c0_i32 = arith.constant 0 : i32
    %c0_i32_0 = arith.constant 0 : i32
    %c0_i32_1 = arith.constant 0 : i32
    return %c0_i32, %c0_i32_0 : i32, i32
  }
  func.func @transform_2(%arg0: i32) -> (i32, i32) {
    %c0_i32 = arith.constant 0 : i32
    %c0_i32_0 = arith.constant 0 : i32
    %c0_i32_1 = arith.constant 0 : i32
    return %c0_i32, %c0_i32_0 : i32, i32
  }
  func.func @transform_3(%arg0: i32) -> (i32, i32) {
    %c0_i32 = arith.constant 0 : i32
    %c0_i32_0 = arith.constant 0 : i32
    %c0_i32_1 = arith.constant 0 : i32
    return %c0_i32, %c0_i32_0 : i32, i32
  }
  func.func @transform_4(%arg0: i32) -> (i32, i32) {
    %c0_i32 = arith.constant 0 : i32
    %c0_i32_0 = arith.constant 0 : i32
    return %arg0, %c0_i32 : i32, i32
  }
  func.func @transform_5(%arg0: i32) -> (i32, i32, i32) {
    %c0_i32 = arith.constant 0 : i32
    %c0_i32_0 = arith.constant 0 : i32
    %c0_i32_1 = arith.constant 0 : i32
    return %arg0, %c0_i32, %c0_i32_0 : i32, i32, i32
  }
}

</mosaic_0001>

<llo_original>
// kernel: quantization_layer_forward.1
$region0: #{quantization_layer_forward.1}
  #allocation0 [shape = 'u32[]', space=smem, size = 0x4, offset = 0x4, fixed_abs, tag = 'smem constant byte address 0x4 - core index']
  #allocation1 [shape = 'u32[144,128]{1,0:T(1,128)}', space=vmem, size = 0x12000, scoped, tag = 'internal scratch']
  %s0 = inlined_call_operand.vmem [shape: f32[224,32], index: 0, kind: input, shape index: {}]
  %s1 = inlined_call_operand.vmem [shape: f32[32,128], index: 1, kind: input, shape index: {}]
  %s2 = inlined_call_operand.vmem [shape: f32[128,32], index: 2, kind: input, shape index: {}]
  %s3 = inlined_call_operand.vmem [shape: f32[1,128], index: 3, kind: input, shape index: {}]
  %s4 = inlined_call_operand.vmem [shape: f32[224,32], index: 4, kind: output, shape index: {0}]
  %s5 = inlined_call_operand.vmem [shape: f32[7,1,128], index: 5, kind: output, shape index: {1}]
  %6 = xla_tuple %s4, %s5
  %s7 = sld [smem:[#allocation0]]
  $region57: #{quantization_layer_forward.1} parent=0
    _
  %s9 = ssub.s32 1, %s7
  %s10 = scalar_select 0, %s9, %s7
  loop: start=0, step=1, limit=9
  $region2: #{quantization_layer_forward.1} parent=0 // loop_pre_header
    _
  $region3: #{quantization_layer_forward.1} parent=0 // loop_header
    %s12 = sphi 0, %s16
    %p13 = scmp.ge.s32.totalorder %s12, 9
    %s22 = sphi 0, %s24
    %s25 = sphi 0, %s22
    %s26 = sphi 0, %s25
    %s42 = sphi 0, %s26
    %s46 = sphi 0, %s46
    %s48 = sphi 0, %s46
    %s49 = sphi 0, %s48
    %s63 = sphi 0, %s49
    %s67 = sphi 0, %s67
    %s69 = sphi 0, %s67
    %s70 = sphi 0, %s69
    %s84 = sphi 0, %s70
    %s88 = sphi 0, %s88
    %s90 = sphi 0, %s88
    %s91 = sphi 0, %s90
    %s105 = sphi 0, %s91
    %s111 = sphi 0, %s113
    %s114 = sphi 0, %s111
    %s115 = sphi 0, %s114
    %s131 = sphi 0, %s115
    %s137 = sphi 0, %s139
    %s140 = sphi 0, %s137
    %s141 = sphi 0, %s140
    %s157 = sphi 0, %s141
  $region4: #{quantization_layer_forward.1} parent=0 // loop_header_branch
    %15 = sbr.rel (%p13) target = $region8
  $region5: #{quantization_layer_forward.1} parent=0 // loop_body
    %s17 = ssub.s32 %s12, 1
    %s18 = ssub.s32 %s12, 2
    %s19 = sadd.s32 %s12, 1
    %s20 = ssub.s32 %s12, %s19
    %p21 = scmp.eq.s32.totalorder %s20, 0
    %s23 = sadd.s32 %s22, 1
    %s24 = scalar_select %p21, %s22, %s23
    %p27 = pneg %p21
    %p28 = scmp.eq.s32.totalorder %s12, 6
    %p29 = por %p27, %p28
    %p30 = scmp.ne.s32.totalorder %s22, %s25
    %p31 = scmp.eq.s32.totalorder %s12, 0
    %p32 = por %p30, %p31
    %p33 = scmp.ne.s32.totalorder %s22, %s25
    %p34 = scmp.eq.s32.totalorder %s17, 6
    %p35 = por %p33, %p34
    %p36 = scmp.ne.s32.totalorder %s25, %s26
    %p37 = scmp.eq.s32.totalorder %s17, 0
    %p38 = por %p36, %p37
    %p39 = scmp.ne.s32.totalorder %s25, %s26
    %p40 = scmp.eq.s32.totalorder %s18, 6
    %p41 = por %p39, %p40
    %p43 = scmp.ne.s32.totalorder %s26, %s42
    %p44 = scmp.eq.s32.totalorder %s18, 0
    %p45 = por %p43, %p44
    %s47 = sadd.s32 %s46, 1
    %p50 = scmp.eq.s32.totalorder %s12, 6
    %p51 = scmp.ne.s32.totalorder %s46, %s48
    %p52 = scmp.eq.s32.totalorder %s12, 0
    %p53 = por %p51, %p52
    %p54 = scmp.ne.s32.totalorder %s46, %s48
    %p55 = scmp.eq.s32.totalorder %s17, 6
    %p56 = por %p54, %p55
    %p57 = scmp.ne.s32.totalorder %s48, %s49
    %p58 = scmp.eq.s32.totalorder %s17, 0
    %p59 = por %p57, %p58
    %p60 = scmp.ne.s32.totalorder %s48, %s49
    %p61 = scmp.eq.s32.totalorder %s18, 6
    %p62 = por %p60, %p61
    %p64 = scmp.ne.s32.totalorder %s49, %s63
    %p65 = scmp.eq.s32.totalorder %s18, 0
    %p66 = por %p64, %p65
    %s68 = sadd.s32 %s67, 1
    %p71 = scmp.eq.s32.totalorder %s12, 6
    %p72 = scmp.ne.s32.totalorder %s67, %s69
    %p73 = scmp.eq.s32.totalorder %s12, 0
    %p74 = por %p72, %p73
    %p75 = scmp.ne.s32.totalorder %s67, %s69
    %p76 = scmp.eq.s32.totalorder %s17, 6
    %p77 = por %p75, %p76
    %p78 = scmp.ne.s32.totalorder %s69, %s70
    %p79 = scmp.eq.s32.totalorder %s17, 0
    %p80 = por %p78, %p79
    %p81 = scmp.ne.s32.totalorder %s69, %s70
    %p82 = scmp.eq.s32.totalorder %s18, 6
    %p83 = por %p81, %p82
    %p85 = scmp.ne.s32.totalorder %s70, %s84
    %p86 = scmp.eq.s32.totalorder %s18, 0
    %p87 = por %p85, %p86
    %s89 = sadd.s32 %s88, 1
    %p92 = scmp.eq.s32.totalorder %s12, 6
    %p93 = scmp.ne.s32.totalorder %s88, %s90
    %p94 = scmp.eq.s32.totalorder %s12, 0
    %p95 = por %p93, %p94
    %p96 = scmp.ne.s32.totalorder %s88, %s90
    %p97 = scmp.eq.s32.totalorder %s17, 6
    %p98 = por %p96, %p97
    %p99 = scmp.ne.s32.totalorder %s90, %s91
    %p100 = scmp.eq.s32.totalorder %s17, 0
    %p101 = por %p99, %p100
    %p102 = scmp.ne.s32.totalorder %s90, %s91
    %p103 = scmp.eq.s32.totalorder %s18, 6
    %p104 = por %p102, %p103
    %p106 = scmp.ne.s32.totalorder %s91, %s105
    %p107 = scmp.eq.s32.totalorder %s18, 0
    %p108 = por %p106, %p107
    %s109 = ssub.s32 %s12, %s19
    %p110 = scmp.eq.s32.totalorder %s109, 0
    %s112 = sadd.s32 %s111, 1
    %s113 = scalar_select %p110, %s111, %s112
    %p116 = pneg %p110
    %p117 = scmp.eq.s32.totalorder %s12, 6
    %p118 = por %p116, %p117
    %p119 = scmp.ne.s32.totalorder %s111, %s114
    %p120 = scmp.eq.s32.totalorder %s12, 0
    %p121 = por %p119, %p120
    %p122 = scmp.ne.s32.totalorder %s111, %s114
    %p123 = scmp.eq.s32.totalorder %s17, 6
    %p124 = por %p122, %p123
    %p125 = scmp.ne.s32.totalorder %s114, %s115
    %p126 = scmp.eq.s32.totalorder %s17, 0
    %p127 = por %p125, %p126
    %p128 = scmp.ne.s32.totalorder %s114, %s115
    %p129 = scmp.eq.s32.totalorder %s18, 6
    %p130 = por %p128, %p129
    %p132 = scmp.ne.s32.totalorder %s115, %s131
    %p133 = scmp.eq.s32.totalorder %s18, 0
    %p134 = por %p132, %p133
    %s135 = ssub.s32 %s12, %s19
    %p136 = scmp.eq.s32.totalorder %s135, 0
    %s138 = sadd.s32 %s137, 1
    %s139 = scalar_select %p136, %s137, %s138
    %p142 = pneg %p136
    %p143 = scmp.eq.s32.totalorder %s12, 6
    %p144 = por %p142, %p143
    %p145 = scmp.ne.s32.totalorder %s137, %s140
    %p146 = scmp.eq.s32.totalorder %s12, 0
    %p147 = por %p145, %p146
    %p148 = scmp.ne.s32.totalorder %s137, %s140
    %p149 = scmp.eq.s32.totalorder %s17, 6
    %p150 = por %p148, %p149
    %p151 = scmp.ne.s32.totalorder %s140, %s141
    %p152 = scmp.eq.s32.totalorder %s17, 0
    %p153 = por %p151, %p152
    %p154 = scmp.ne.s32.totalorder %s140, %s141
    %p155 = scmp.eq.s32.totalorder %s18, 6
    %p156 = por %p154, %p155
    %p158 = scmp.ne.s32.totalorder %s141, %s157
    %p159 = scmp.eq.s32.totalorder %s18, 0
    %p160 = por %p158, %p159
    %p161 = scmp.le.s32.totalorder 1, %s12
    %p162 = scmp.lt.s32.totalorder %s12, 8
    %p163 = pnand %p161, %p162
    %p164 = pneg %p163
    // Predicated region
    $region9: #{quantization_layer_forward.1} parent=5 // pred_check
      _
    $region10: #{quantization_layer_forward.1} parent=5 // pred_check_branch
      %166 = sbr.rel (%p163) target = $region12
    $region11: #{quantization_layer_forward.1} parent=5 // pred_region
      %s167 = ssub.s32 %s12, 1
      // Predicated region
      $region13: #{quantization_layer_forward.1} parent=11 // pred_check
        %p168 = pneg %p59
      $region14: #{quantization_layer_forward.1} parent=11 // pred_check_branch
        %170 = sbr.rel (%p168) target = $region16
      $region15: #{quantization_layer_forward.1} parent=11 // pred_region
        _
      $region16: #{quantization_layer_forward.1} parent=11 // pred_fallthru
        _
      // Predicated region
      $region17: #{quantization_layer_forward.1} parent=11 // pred_check
        %p171 = pneg %p80
      $region18: #{quantization_layer_forward.1} parent=11 // pred_check_branch
        %173 = sbr.rel (%p171) target = $region20
      $region19: #{quantization_layer_forward.1} parent=11 // pred_region
        _
      $region20: #{quantization_layer_forward.1} parent=11 // pred_fallthru
        _
      // Predicated region
      $region21: #{quantization_layer_forward.1} parent=11 // pred_check
        %p174 = pneg %p101
      $region22: #{quantization_layer_forward.1} parent=11 // pred_check_branch
        %176 = sbr.rel (%p174) target = $region24
      $region23: #{quantization_layer_forward.1} parent=11 // pred_region
        _
      $region24: #{quantization_layer_forward.1} parent=11 // pred_fallthru
        _
    $region12: #{quantization_layer_forward.1} parent=5 // pred_fallthru
      _
    %p177 = scmp.lt.s32.totalorder %s12, 7
    // Predicated region
    $region25: #{quantization_layer_forward.1} parent=5 // pred_check
      %p178 = pneg %p177
    $region26: #{quantization_layer_forward.1} parent=5 // pred_check_branch
      %180 = sbr.rel (%p178) target = $region28
    $region27: #{quantization_layer_forward.1} parent=5 // pred_region
      // Predicated region
      $region29: #{quantization_layer_forward.1} parent=27 // pred_check
        %p181 = pneg %p32
      $region30: #{quantization_layer_forward.1} parent=27 // pred_check_branch
        %183 = sbr.rel (%p181) target = $region32
      $region31: #{quantization_layer_forward.1} parent=27 // pred_region
        %s184 = smul.u32 4, %s12
        %p185 = scmp.lt.s32.totalorder %s184, 27
        %s186 = scalar_select %p185, %s184, 27
        %s187 = smul.addr %s186, 8
        %s188 = scalar_lea.vmem %s0, %s187
        %s189 = smul.u32 4, %s12
      $region32: #{quantization_layer_forward.1} parent=27 // pred_fallthru
        _
    $region28: #{quantization_layer_forward.1} parent=5 // pred_fallthru
      _
    %p190 = scmp.le.s32.totalorder 1, %s12
    %p191 = scmp.lt.s32.totalorder %s12, 8
    %p192 = pnand %p190, %p191
    %p193 = pneg %p192
    // Predicated region
    $region33: #{quantization_layer_forward.1} parent=5 // pred_check
      _
    $region34: #{quantization_layer_forward.1} parent=5 // pred_check_branch
      %195 = sbr.rel (%p192) target = $region36
    $region35: #{quantization_layer_forward.1} parent=5 // pred_region
      %s196 = ssub.s32 %s12, 1
      %s197 = smul.u32 4, %s17
      %p198 = scmp.lt.s32.totalorder %s197, 27
      %s199 = scalar_select %p198, %s197, 27
      %s200 = smul.addr %s199, 8
      %s201 = scalar_lea.vmem %s0, %s200
      %p202 = pneg %p38
      %p203 = pneg %p35
      %p204 = pneg %p59
      %p205 = pneg %p56
      %p206 = pneg %p80
      %p207 = pneg %p77
      %p208 = pneg %p101
      %p209 = pneg %p98
      %p210 = pneg %p127
      %p211 = pneg %p124
      %s212 = smul.u32 4, %s17
      %p213 = scmp.lt.s32.totalorder %s212, 27
      %s214 = scalar_select %p213, %s212, 27
      %s215 = smul.addr %s214, 8
      %s216 = scalar_lea.vmem %s4, %s215
      %p217 = pneg %p153
      %p218 = pneg %p150
      %p219 = scmp.lt.s32.totalorder %s17, 6
      %s220 = scalar_select %p219, %s17, 6
      %s221 = scalar_lea.vmem %s5, %s220
      %s222 = smul.u32 4, %s17
      %p223 = scmp.lt.s32.totalorder %s222, 27
      %s224 = scalar_select %p223, %s222, 27
      %s225 = smul.addr %s224, 8
      %s226 = scalar_lea.vmem %s0, %s225
      %s227 = smul.u32 4, %s17
      %s228 = smul.u32 4, %s17
      %p229 = scmp.lt.s32.totalorder %s228, 27
      %s230 = scalar_select %p229, %s228, 27
      %s231 = smul.addr %s230, 8
      %s232 = scalar_lea.vmem %s4, %s231
      %s233 = smul.u32 4, %s17
      %p234 = scmp.lt.s32.totalorder %s17, 6
      %s235 = scalar_select %p234, %s17, 6
      %s236 = scalar_lea.vmem %s5, %s235
      %v237 = vld [vmem:[%s1] sm:$0xff]
      %v238 = vld [vmem:[%s1 + $0x8] sm:$0xff]
      %v239 = vld [vmem:[%s1 + $0x10] sm:$0xff]
      %v240 = vld [vmem:[%s1 + $0x18] sm:$0xff]
      %v241 = vld [vmem:[%s2] sm:$0xff]
      %v242 = vld [vmem:[%s2 + $0x8] sm:$0xff]
      %v243 = vld [vmem:[%s2 + $0x10] sm:$0xff]
      %v244 = vld [vmem:[%s2 + $0x18] sm:$0xff]
      %v245 = vld [vmem:[%s2 + $0x20] sm:$0xff]
      %v246 = vld [vmem:[%s2 + $0x28] sm:$0xff]
      %v247 = vld [vmem:[%s2 + $0x30] sm:$0xff]
      %v248 = vld [vmem:[%s2 + $0x38] sm:$0xff]
      %v249 = vld [vmem:[%s2 + $0x40] sm:$0xff]
      %v250 = vld [vmem:[%s2 + $0x48] sm:$0xff]
      %v251 = vld [vmem:[%s2 + $0x50] sm:$0xff]
      %v252 = vld [vmem:[%s2 + $0x58] sm:$0xff]
      %v253 = vld [vmem:[%s2 + $0x60] sm:$0xff]
      %v254 = vld [vmem:[%s2 + $0x68] sm:$0xff]
      %v255 = vld [vmem:[%s2 + $0x70] sm:$0xff]
      %v256 = vld [vmem:[%s2 + $0x78] sm:$0xff]
      %v257 = vld [vmem:[%s3] sm:$0x1]
      %s258 = smul.u32 %s17, 32
      %v259 = vld [vmem:[%s226] sm:$0xff]
      %v260 = vld [vmem:[%s226 + $0x8] sm:$0xff]
      %v261 = vld [vmem:[%s226 + $0x10] sm:$0xff]
      %v262 = vld [vmem:[%s226 + $0x18] sm:$0xff]
      %vm263 = vcmask 261120
      %v265 = vsel %vm263, %v259, 0
      %v268 = vsel %vm263, %v260, 0
      %v271 = vsel %vm263, %v261, 0
      %v274 = vsel %vm263, %v262, 0
      %276 = vmatprep.subr.mxu0 0.0
      %277 = vmatpush1.msra.mxu0 0.0
      %278 = vmatprep.subr.mxu0 0.0
      %279 = vmatpush1.msra.mxu0 0.0
      %280 = vmatprep.subr.mxu0 0.0
      %281 = vmatpush1.msra.mxu0 0.0
      %282 = vmatprep.subr.mxu0 0.0
      %283 = vmatpush1.msra.mxu0 0.0
      %284 = vmatprep.subr.mxu0 0.0
      %285 = vmatpush1.msra.mxu0 0.0
      %286 = vmatprep.subr.mxu0 0.0
      %287 = vmatpush1.msra.mxu0 0.0
      %288 = vmatprep.subr.mxu0 0.0
      %289 = vmatpush1.msra.mxu0 0.0
      %290 = vmatprep.subr.mxu0 0.0
      %291 = vmatpush1.msra.mxu0 0.0
      %292 = vmatprep.subr.mxu0 0.0
      %293 = vmatpush1.msra.mxu0 0.0
      %294 = vmatprep.subr.mxu0 0.0
      %295 = vmatpush1.msra.mxu0 0.0
      %296 = vmatprep.subr.mxu0 0.0
      %297 = vmatpush1.msra.mxu0 0.0
      %298 = vmatprep.subr.mxu0 0.0
      %299 = vmatpush1.msra.mxu0 0.0
      %300 = vmatprep.subr.mxu0 0.0
      %301 = vmatpush1.msra.mxu0 %v240
      %302 = vmatprep.subr.mxu0 0.0
      %303 = vmatpush1.msra.mxu0 %v239
      %304 = vmatprep.subr.mxu0 0.0
      %305 = vmatpush1.msra.mxu0 %v238
      %306 = vmatprep.subr.mxu0 0.0
      %307 = vmatpush1.msra.mxu0 %v237
      %308 = vmatprep.subr.mxu0 0.0
      %309 = vmatpush2.msra.mxu0 0.0
      %310 = vmatprep.subr.mxu0 0.0
      %311 = vmatpush2.msra.mxu0 0.0
      %312 = vmatprep.subr.mxu0 0.0
      %313 = vmatpush2.msra.mxu0 0.0
      %314 = vmatprep.subr.mxu0 0.0
      %315 = vmatpush2.msra.mxu0 0.0
      %316 = vmatprep.subr.mxu0 0.0
      %317 = vmatpush2.msra.mxu0 0.0
      %318 = vmatprep.subr.mxu0 0.0
      %319 = vmatpush2.msra.mxu0 0.0
      %320 = vmatprep.subr.mxu0 0.0
      %321 = vmatpush2.msra.mxu0 0.0
      %322 = vmatprep.subr.mxu0 0.0
      %323 = vmatpush2.msra.mxu0 0.0
      %324 = vmatprep.subr.mxu0 0.0
      %325 = vmatpush2.msra.mxu0 0.0
      %326 = vmatprep.subr.mxu0 0.0
      %327 = vmatpush2.msra.mxu0 0.0
      %328 = vmatprep.subr.mxu0 0.0
      %329 = vmatpush2.msra.mxu0 0.0
      %330 = vmatprep.subr.mxu0 0.0
      %331 = vmatpush2.msra.mxu0 0.0
      %332 = vmatprep.subr.mxu0 0.0
      %333 = vmatpush2.msra.mxu0 0.0
      %334 = vmatprep.subr.mxu0 0.0
      %335 = vmatpush2.msra.mxu0 0.0
      %336 = vmatprep.subr.mxu0 0.0
      %337 = vmatpush2.msra.mxu0 0.0
      %338 = vmatprep.subr.mxu0 0.0
      %339 = vmatpush2.msra.mxu0 0.0
      %340 = vmatprep.mubr.f32.mxu0 0.0
      %341 = vmatmul.mubr.f32.gmra.mxu0 %v265
      %v342 = vpop.f32.mrf.mxu0
      %v343 = vadd.f32 0.0, %v342
      %v344 = vpop.f32.mrf.mxu0
      %345 = vmatprep.mubr.f32.mxu0 0.0
      %346 = vmatmul.mubr.f32.gmra.mxu0 %v268
      %v347 = vpop.f32.mrf.mxu0
      %v348 = vadd.f32 0.0, %v347
      %v349 = vpop.f32.mrf.mxu0
      %350 = vmatprep.mubr.f32.mxu0 0.0
      %351 = vmatmul.mubr.f32.gmra.mxu0 %v271
      %v352 = vpop.f32.mrf.mxu0
      %v353 = vadd.f32 0.0, %v352
      %v354 = vpop.f32.mrf.mxu0
      %355 = vmatprep.mubr.f32.mxu0 0.0
      %356 = vmatmul.mubr.f32.gmra.mxu0 %v274
      %v357 = vpop.f32.mrf.mxu0
      %v358 = vadd.f32 0.0, %v357
      %v359 = vpop.f32.mrf.mxu0
      %360 = vdwg.mxu0
      %v362 = vlaneseq
      %v363 = vshrl.u32 %v362, 7
      %v364 = vsub.s32 0, %v363
      %v365 = vrot.slane %v257, %v364
      %v367 = vsub.f32 %v365, %v343
      %v368 = vsub.f32 %v365, %v348
      %v369 = vsub.f32 %v365, %v353
      %v370 = vsub.f32 %v365, %v358
      %371 = vmin.index.xlane.f32.xlu0 %v367
      %v372 = vpop.xlane.xlu0 %371
      %373 = vmin.index.xlane.f32.xlu0 %v368
      %v374 = vpop.xlane.xlu0 %373
      %375 = vmin.index.xlane.f32.xlu0 %v369
      %v376 = vpop.xlane.xlu0 %375
      %377 = vmin.index.xlane.f32.xlu0 %v370
      %v378 = vpop.xlane.xlu0 %377
      %v379 = vlaneseq
      %v380 = vand.u32 %v379, 127
      %vm381 = vcmp.eq.s32.totalorder %v380, %v372
      %vm382 = vcmp.eq.s32.totalorder %v380, %v374
      %vm383 = vcmp.eq.s32.totalorder %v380, %v376
      %vm384 = vcmp.eq.s32.totalorder %v380, %v378
      %v385 = vsel %vm381, 1, 0
      %v386 = vsel %vm382, 1, 0
      %v387 = vsel %vm383, 1, 0
      %v388 = vsel %vm384, 1, 0
      %v389 = vcvt.s32.f32 %v385
      %v390 = vcvt.s32.f32 %v386
      %v391 = vcvt.s32.f32 %v387
      %v392 = vcvt.s32.f32 %v388
      %393 = vmatprep.subr.mxu0 0.0
      %394 = vmatpush1.msra.mxu0 %v256
      %395 = vmatprep.subr.mxu0 0.0
      %396 = vmatpush1.msra.mxu0 %v255
      %397 = vmatprep.subr.mxu0 0.0
      %398 = vmatpush1.msra.mxu0 %v254
      %399 = vmatprep.subr.mxu0 0.0
      %400 = vmatpush1.msra.mxu0 %v253
      %401 = vmatprep.subr.mxu0 0.0
      %402 = vmatpush1.msra.mxu0 %v252
      %403 = vmatprep.subr.mxu0 0.0
      %404 = vmatpush1.msra.mxu0 %v251
      %405 = vmatprep.subr.mxu0 0.0
      %406 = vmatpush1.msra.mxu0 %v250
      %407 = vmatprep.subr.mxu0 0.0
      %408 = vmatpush1.msra.mxu0 %v249
      %409 = vmatprep.subr.mxu0 0.0
      %410 = vmatpush1.msra.mxu0 %v248
      %411 = vmatprep.subr.mxu0 0.0
      %412 = vmatpush1.msra.mxu0 %v247
      %413 = vmatprep.subr.mxu0 0.0
      %414 = vmatpush1.msra.mxu0 %v246
      %415 = vmatprep.subr.mxu0 0.0
      %416 = vmatpush1.msra.mxu0 %v245
      %417 = vmatprep.subr.mxu0 0.0
      %418 = vmatpush1.msra.mxu0 %v244
      %419 = vmatprep.subr.mxu0 0.0
      %420 = vmatpush1.msra.mxu0 %v243
      %421 = vmatprep.subr.mxu0 0.0
      %422 = vmatpush1.msra.mxu0 %v242
      %423 = vmatprep.subr.mxu0 0.0
      %424 = vmatpush1.msra.mxu0 %v241
      %425 = vmatprep.subr.mxu0 0.0
      %426 = vmatpush2.msra.mxu0 0.0
      %427 = vmatprep.subr.mxu0 0.0
      %428 = vmatpush2.msra.mxu0 0.0
      %429 = vmatprep.subr.mxu0 0.0
      %430 = vmatpush2.msra.mxu0 0.0
      %431 = vmatprep.subr.mxu0 0.0
      %432 = vmatpush2.msra.mxu0 0.0
      %433 = vmatprep.subr.mxu0 0.0
      %434 = vmatpush2.msra.mxu0 0.0
      %435 = vmatprep.subr.mxu0 0.0
      %436 = vmatpush2.msra.mxu0 0.0
      %437 = vmatprep.subr.mxu0 0.0
      %438 = vmatpush2.msra.mxu0 0.0
      %439 = vmatprep.subr.mxu0 0.0
      %440 = vmatpush2.msra.mxu0 0.0
      %441 = vmatprep.subr.mxu0 0.0
      %442 = vmatpush2.msra.mxu0 0.0
      %443 = vmatprep.subr.mxu0 0.0
      %444 = vmatpush2.msra.mxu0 0.0
      %445 = vmatprep.subr.mxu0 0.0
      %446 = vmatpush2.msra.mxu0 0.0
      %447 = vmatprep.subr.mxu0 0.0
      %448 = vmatpush2.msra.mxu0 0.0
      %449 = vmatprep.subr.mxu0 0.0
      %450 = vmatpush2.msra.mxu0 0.0
      %451 = vmatprep.subr.mxu0 0.0
      %452 = vmatpush2.msra.mxu0 0.0
      %453 = vmatprep.subr.mxu0 0.0
      %454 = vmatpush2.msra.mxu0 0.0
      %455 = vmatprep.subr.mxu0 0.0
      %456 = vmatpush2.msra.mxu0 0.0
      %457 = vmatprep.mubr.f32.mxu0 0.0
      %458 = vmatmul.mubr.f32.gmra.mxu0 %v389
      %v459 = vpop.f32.mrf.mxu0
      %v460 = vadd.f32 0.0, %v459
      %v461 = vpop.f32.mrf.mxu0
      %462 = vmatprep.mubr.f32.mxu0 0.0
      %463 = vmatmul.mubr.f32.gmra.mxu0 %v390
      %v464 = vpop.f32.mrf.mxu0
      %v465 = vadd.f32 0.0, %v464
      %v466 = vpop.f32.mrf.mxu0
      %467 = vmatprep.mubr.f32.mxu0 0.0
      %468 = vmatmul.mubr.f32.gmra.mxu0 %v391
      %v469 = vpop.f32.mrf.mxu0
      %v470 = vadd.f32 0.0, %v469
      %v471 = vpop.f32.mrf.mxu0
      %472 = vmatprep.mubr.f32.mxu0 0.0
      %473 = vmatmul.mubr.f32.gmra.mxu0 %v392
      %v474 = vpop.f32.mrf.mxu0
      %v475 = vadd.f32 0.0, %v474
      %v476 = vpop.f32.mrf.mxu0
      %477 = vdwg.mxu0
      %478 = vst.msk [vmem:[%s232] sm:$0xff] %vm263, %v460
      %479 = vst.msk [vmem:[%s232 + $0x8] sm:$0xff] %vm263, %v465
      %480 = vst.msk [vmem:[%s232 + $0x10] sm:$0xff] %vm263, %v470
      %481 = vst.msk [vmem:[%s232 + $0x18] sm:$0xff] %vm263, %v475
      %s482 = sadd.s32 %s258, 0
      %v483 = vlaneseq
      %v484 = vshrl.u32 %v483, 7
      %v485 = vadd.s32 %v484, 8
      %v486 = vadd.s32 %v484, 16
      %v487 = vadd.s32 %v484, 24
      %v488 = vstv %s482
      %v489 = vadd.s32 %v488, %v484
      %v490 = vadd.s32 %v488, %v485
      %v491 = vadd.s32 %v488, %v486
      %v492 = vadd.s32 %v488, %v487
      %vm493 = vcmp.lt.s32.totalorder %v489, 200
      %vm494 = vcmp.lt.s32.totalorder %v490, 200
      %vm495 = vcmp.lt.s32.totalorder %v491, 200
      %vm496 = vcmp.lt.s32.totalorder %v492, 200
      %v497 = vsub.f32 %v460, %v259
      %v498 = vsub.f32 %v465, %v260
      %v499 = vsub.f32 %v470, %v261
      %v500 = vsub.f32 %v475, %v262
      %v501 = vsel %vm493, 1, 0
      %v502 = vsel %vm494, 1, 0
      %v503 = vsel %vm495, 1, 0
      %v504 = vsel %vm496, 1, 0
      %vm505 = vcmp.eq.s32.totalorder %v501, 1
      %vm506 = vcmp.eq.s32.totalorder %v502, 1
      %vm507 = vcmp.eq.s32.totalorder %v503, 1
      %vm508 = vcmp.eq.s32.totalorder %v504, 1
      %v509 = vsel %vm505, %v497, 0.0
      %v510 = vsel %vm506, %v498, 0.0
      %v511 = vsel %vm507, %v499, 0.0
      %v512 = vsel %vm508, %v500, 0.0
      %v513 = vmul.f32 %v509, %v509
      %v514 = vmul.f32 %v510, %v510
      %v515 = vmul.f32 %v511, %v511
      %v516 = vmul.f32 %v512, %v512
      %v517 = vsel %vm263, %v513, 0.0
      %v518 = vsel %vm263, %v514, 0.0
      %v519 = vadd.f32 %v517, %v518
      %v520 = vsel %vm263, %v515, 0.0
      %v521 = vadd.f32 %v519, %v520
      %v522 = vsel %vm263, %v516, 0.0
      %v523 = vadd.f32 %v521, %v522
      %524 = vadd.xlane.f32.xlu0 %v523
      %v525 = vpop.xlane.xlu0 %524
      %v526 = vrot.slane %v525, 4
      %v527 = vadd.f32 %v525, %v526
      %v528 = vrot.slane %v527, 2
      %v529 = vadd.f32 %v527, %v528
      %v530 = vrot.slane %v529, 1
      %v531 = vadd.f32 %v529, %v530
      %s532 = vtos %v531
      %s533 = sadd.f32 %s532, 0.0
      %v534 = vstv %s533
      %535 = vst [vmem:[%s236] sm:$0x1] %v534
      %s536 = smul.u32 4, %s17
      %p537 = scmp.lt.s32.totalorder %s536, 27
      %s538 = scalar_select %p537, %s536, 27
      %s539 = smul.addr %s538, 8
      %s540 = scalar_lea.vmem %s4, %s539
      %p541 = scmp.lt.s32.totalorder %s17, 6
      %s542 = scalar_select %p541, %s17, 6
      %s543 = scalar_lea.vmem %s5, %s542
      // Predicated region
      $region37: #{quantization_layer_forward.1} parent=35 // pred_check
        %p544 = pneg %p124
      $region38: #{quantization_layer_forward.1} parent=35 // pred_check_branch
        %546 = sbr.rel (%p544) target = $region40
      $region39: #{quantization_layer_forward.1} parent=35 // pred_region
        %s547 = smul.u32 4, %s17
      $region40: #{quantization_layer_forward.1} parent=35 // pred_fallthru
        _
      // Predicated region
      $region41: #{quantization_layer_forward.1} parent=35 // pred_check
        %p548 = pneg %p150
      $region42: #{quantization_layer_forward.1} parent=35 // pred_check_branch
        %550 = sbr.rel (%p548) target = $region44
      $region43: #{quantization_layer_forward.1} parent=35 // pred_region
        _
      $region44: #{quantization_layer_forward.1} parent=35 // pred_fallthru
        _
    $region36: #{quantization_layer_forward.1} parent=5 // pred_fallthru
      _
    %p551 = scmp.le.s32.totalorder 2, %s12
    // Predicated region
    $region45: #{quantization_layer_forward.1} parent=5 // pred_check
      %p552 = pneg %p551
    $region46: #{quantization_layer_forward.1} parent=5 // pred_check_branch
      %554 = sbr.rel (%p552) target = $region48
    $region47: #{quantization_layer_forward.1} parent=5 // pred_region
      %s555 = ssub.s32 %s12, 2
      // Predicated region
      $region49: #{quantization_layer_forward.1} parent=47 // pred_check
        %p556 = pneg %p130
      $region50: #{quantization_layer_forward.1} parent=47 // pred_check_branch
        %558 = sbr.rel (%p556) target = $region52
      $region51: #{quantization_layer_forward.1} parent=47 // pred_region
        %s559 = smul.u32 4, %s18
        %p560 = scmp.lt.s32.totalorder %s559, 27
        %s561 = scalar_select %p560, %s559, 27
        %s562 = smul.addr %s561, 8
        %s563 = scalar_lea.vmem %s4, %s562
      $region52: #{quantization_layer_forward.1} parent=47 // pred_fallthru
        _
      // Predicated region
      $region53: #{quantization_layer_forward.1} parent=47 // pred_check
        %p564 = pneg %p156
      $region54: #{quantization_layer_forward.1} parent=47 // pred_check_branch
        %566 = sbr.rel (%p564) target = $region56
      $region55: #{quantization_layer_forward.1} parent=47 // pred_region
        %p567 = scmp.lt.s32.totalorder %s18, 6
        %s568 = scalar_select %p567, %s18, 6
        %s569 = scalar_lea.vmem %s5, %s568
      $region56: #{quantization_layer_forward.1} parent=47 // pred_fallthru
        _
    $region48: #{quantization_layer_forward.1} parent=5 // pred_fallthru
      _
  $region6: #{quantization_layer_forward.1} parent=0 // loop_footer
    %s16 = sadd.s32 1, %s12
  $region7: #{quantization_layer_forward.1} parent=0 // loop_footer_branch
    %11 = sbr.rel target = $region3
  $region8: #{quantization_layer_forward.1} parent=0 // loop_exit
    _

</llo_original>
